<compile_context>
chip_gen: v7x
topology: tpu7x:2x2x1
jax: 0.10.0
libtpu: 0.0.40
codegen_flags: <defaults>
</compile_context>

<pallas_src>
import functools

import jax
import jax.numpy as jnp
from jax.experimental import pallas as pl
from jax.experimental.pallas import tpu as pltpu

LANES = 128
BF16_SUBLANES = 16   # bf16 packs 16 rows per sublane pair; round batch tiles to this


def _round_up(x, m):
    return ((x + m - 1) // m) * m


def encoder_style_kernel(x_ref, w1_ref, b1_ref, w2_ref, b2_ref, wz_ref, bz_ref,
                         z_ref):
    # bf16 MXU operands with f32 accumulation; bias-add + ReLU stay f32 on the VPU.
    x = x_ref[...].astype(jnp.bfloat16)            # in-kernel cast: no HBM round trip
    h = jnp.dot(x, w1_ref[...], preferred_element_type=jnp.float32)
    h = jnp.maximum(h + b1_ref[...], 0.0)
    h = jnp.dot(h.astype(jnp.bfloat16), w2_ref[...],
                preferred_element_type=jnp.float32)
    h = jnp.maximum(h + b2_ref[...], 0.0)
    # last_block (shared by z_mean and z_std): single lane-dense store; z_std is
    # a zero-cost alias of z_mean in the wrapper.
    z = jnp.dot(h.astype(jnp.bfloat16), wz_ref[...],
                preferred_element_type=jnp.float32) + bz_ref[...]
    z_ref[...] = z.astype(z_ref.dtype)


def prepare_encoder_params(params):
    """One-time setup: pad feature dims to 128 lanes, cast weights to bf16.

    Zero-padding is exact: padded hidden columns see zero weight + zero bias,
    so relu(0)=0 and they contribute nothing downstream. Returns
    ((padded params), d_z). Call once at model setup, not per forward.
    """
    w1, b1, w2, b2, wz, bz = params
    d_in, d_hid = w1.shape
    d_z = wz.shape[1]
    d_hid_p = _round_up(d_hid, LANES)
    d_z_p = _round_up(d_z, LANES)
    # TODO(synk): on v6e/v7x, padding toward 256 once d_hid/d_z naturally exceed
    # 128 would double MXU column utilization; 128 is already exact for v5e.
    w1p = jnp.pad(w1, ((0, 0), (0, d_hid_p - d_hid))).astype(jnp.bfloat16)
    b1p = jnp.pad(b1.reshape(1, -1).astype(jnp.float32),
                  ((0, 0), (0, d_hid_p - d_hid)))
    w2p = jnp.pad(w2, ((0, d_hid_p - d_hid), (0, d_hid_p - d_hid))).astype(jnp.bfloat16)
    b2p = jnp.pad(b2.reshape(1, -1).astype(jnp.float32),
                  ((0, 0), (0, d_hid_p - d_hid)))
    wzp = jnp.pad(wz, ((0, d_hid_p - d_hid), (0, d_z_p - d_z))).astype(jnp.bfloat16)
    bzp = jnp.pad(bz.reshape(1, -1).astype(jnp.float32),
                  ((0, 0), (0, d_z_p - d_z)))
    return (w1p, b1p, w2p, b2p, wzp, bzp), d_z


def _choose_batch_tile(B, tile_b):
    # Aim for >=2 grid steps (so v7x's 2 TensorCores both get work), rounded to
    # the bf16 sublane tile; never rounds b_pad up by anywhere near a full tile.
    tb = max(BF16_SUBLANES, _round_up(pl.cdiv(B, 2), BF16_SUBLANES))
    tb = min(tb, tile_b)
    b_pad = _round_up(B, tb)
    return tb, b_pad


@functools.partial(jax.jit,
                   static_argnames=("tb", "b_pad", "single_buffer_weights"))
def _encoder_call(x, w1, b1, w2, b2, wz, bz, *, tb, b_pad,
                  single_buffer_weights):
    B, d_in = x.shape
    d_hid_p = w1.shape[1]
    d_z_p = wz.shape[1]

    if b_pad != B:  # minimal ragged-tail padding (< one tile by construction)
        x = jnp.pad(x, ((0, b_pad - B), (0, 0)))

    # Pinned (index_map == (0,0)) weights: single-buffer them so a large d_hid
    # doesn't double its VMEM footprint (matters on v7x's 64 MiB VMEM).
    pin_kwargs = {"pipeline_mode": pl.Buffered(1)} if single_buffer_weights else {}

    def pinned(shape):
        return pl.BlockSpec(shape, lambda i: (0, 0), **pin_kwargs)

    grid = (b_pad // tb,)

    # Explicit VMEM budget (v5e default scoped limit is only 16 MiB).
    nbuf_w = 1 if single_buffer_weights else 2
    weight_bytes = nbuf_w * (2 * (w1.size + w2.size + wz.size)
                             + 4 * (b1.size + b2.size + bz.size))
    act_bytes = 2 * (tb * d_in * 4 + tb * d_z_p * 4)      # double-buffered x/out tiles
    scratch_bytes = 2 * tb * d_hid_p * 4                  # slack for the f32 h tile
    vmem_limit = int(min(max(2 * (weight_bytes + act_bytes + scratch_bytes),
                             32 << 20), 100 << 20))

    flops = 2 * b_pad * (d_in * d_hid_p + d_hid_p * d_hid_p + d_hid_p * d_z_p)
    bytes_accessed = int(b_pad * d_in * 4 + weight_bytes // nbuf_w
                         + b_pad * d_z_p * 4)

    return pl.pallas_call(
        encoder_style_kernel,
        out_shape=jax.ShapeDtypeStruct((b_pad, d_z_p), jnp.float32),
        grid=grid,
        in_specs=[
            pl.BlockSpec((tb, d_in), lambda i: (i, 0)),   # x tile (streamed)
            pinned((d_in, d_hid_p)),                      # w1
            pinned((1, d_hid_p)),                         # b1
            pinned((d_hid_p, d_hid_p)),                   # w2
            pinned((1, d_hid_p)),                         # b2
            pinned((d_hid_p, d_z_p)),                     # wz (shared last_block)
            pinned((1, d_z_p)),                           # bz
        ],
        out_specs=pl.BlockSpec((tb, d_z_p), lambda i: (i, 0)),
        compiler_params=pltpu.CompilerParams(
            dimension_semantics=("parallel",),
            vmem_limit_bytes=vmem_limit),
        cost_estimate=pl.CostEstimate(
            flops=flops, transcendentals=0, bytes_accessed=bytes_accessed),
    )(x, w1, b1, w2, b2, wz, bz)


def encoder_style(x, prepared, *, tile_b=1024):
    """Fused EncoderStyle forward. `prepared` = prepare_encoder_params(params)."""
    (w1, b1, w2, b2, wz, bz), d_z = prepared
    B = x.shape[0]
    tb, b_pad = _choose_batch_tile(B, tile_b)
    try:
        z_pad = _encoder_call(x, w1, b1, w2, b2, wz, bz, tb=tb, b_pad=b_pad,
                              single_buffer_weights=True)
    except Exception:
        # Installed JAX rejects BlockSpec(pipeline_mode=Buffered(1)): fall back
        # to default double-buffered pinned weights (identical numerics).
        z_pad = _encoder_call(x, w1, b1, w2, b2, wz, bz, tb=tb, b_pad=b_pad,
                              single_buffer_weights=False)
    # Slice away batch/lane padding; z_std IS z_mean (shared last_block), so it
    # is a zero-cost alias — no second store, no duplicate writeback.
    z = z_pad[:B, :d_z]
    return z, z


def encoder_style_ref(x, params):
    """Pure-JAX reference with the same bf16-operand / f32-accumulate recipe."""
    w1, b1, w2, b2, wz, bz = params
    bf = jnp.bfloat16
    h = jnp.dot(x.astype(bf), w1.astype(bf), preferred_element_type=jnp.float32)
    h = jnp.maximum(h + b1, 0.0)
    h = jnp.dot(h.astype(bf), w2.astype(bf), preferred_element_type=jnp.float32)
    h = jnp.maximum(h + b2, 0.0)
    z = jnp.dot(h.astype(bf), wz.astype(bf), preferred_element_type=jnp.float32) + bz
    return z, z


if __name__ == "__main__":
    # Shapes implied by the forward: flattened feature input -> MLP -> latent.
    B, D_IN, D_HID, D_Z = 8, 32, 64, 16

    key = jax.random.PRNGKey(0)
    kx, k1, k2, k3, k4, k5, k6, kx2 = jax.random.split(key, 8)

    x = jax.random.normal(kx, (B, D_IN), dtype=jnp.float32)

    # Deterministic synthetic parameters (scaled like a standard init).
    w1 = jax.random.normal(k1, (D_IN, D_HID), jnp.float32) * (1.0 / jnp.sqrt(D_IN))
    b1 = jax.random.normal(k2, (1, D_HID), jnp.float32) * 0.01
    w2 = jax.random.normal(k3, (D_HID, D_HID), jnp.float32) * (1.0 / jnp.sqrt(D_HID))
    b2 = jax.random.normal(k4, (1, D_HID), jnp.float32) * 0.01
    wz = jax.random.normal(k5, (D_HID, D_Z), jnp.float32) * (1.0 / jnp.sqrt(D_HID))
    bz = jax.random.normal(k6, (1, D_Z), jnp.float32) * 0.01
    params = (w1, b1, w2, b2, wz, bz)

    prepared = prepare_encoder_params(params)   # one-time pad + bf16 cast

    z_mean, z_std = encoder_style(x, prepared)
    jax.block_until_ready((z_mean, z_std))

    zm_ref, _ = encoder_style_ref(x, params)
    assert z_mean.shape == (B, D_Z) and z_std.shape == (B, D_Z)
    assert jnp.allclose(z_mean, zm_ref, atol=2e-3, rtol=2e-3)
    # Sanity vs. pure f32 math (bf16 operand rounding only).
    zf32 = jnp.maximum(jnp.maximum(x @ w1 + b1, 0.0) @ w2 + b2, 0.0) @ wz + bz
    assert jnp.allclose(z_mean, zf32, atol=1e-1, rtol=1e-1)
    # Shared last_block -> identical outputs (same array, zero-cost alias).
    assert z_mean is z_std or jnp.array_equal(z_mean, z_std)

    # Second shape: ragged batch exercising >=2 grid tiles (tb=64, grid=(2,)).
    x2 = jax.random.normal(kx2, (100, D_IN), dtype=jnp.float32)
    z2_mean, z2_std = encoder_style(x2, prepared)
    jax.block_until_ready((z2_mean, z2_std))
    z2_ref, _ = encoder_style_ref(x2, params)
    assert z2_mean.shape == (100, D_Z)
    assert jnp.allclose(z2_mean, z2_ref, atol=2e-3, rtol=2e-3)

    print("KERNEL_OK")
</pallas_src>

<mosaic_0001>
module attributes {stable_mosaic.version = 11 : i64} {
  func.func @encoder_style_kernel(%arg0: i32, %arg1: memref<16x32xf32, #tpu.memory_space<vmem>>, %arg2: memref<32x128xbf16, #tpu.memory_space<vmem>>, %arg3: memref<1x128xf32, #tpu.memory_space<vmem>>, %arg4: memref<128x128xbf16, #tpu.memory_space<vmem>>, %arg5: memref<1x128xf32, #tpu.memory_space<vmem>>, %arg6: memref<128x128xbf16, #tpu.memory_space<vmem>>, %arg7: memref<1x128xf32, #tpu.memory_space<vmem>>, %arg8: memref<16x128xf32, #tpu.memory_space<vmem>>) attributes {dimension_semantics = [#tpu.dimension_semantics<parallel>], iteration_bounds = array<i64: 1>, scalar_prefetch = 0 : i64, scratch_operands = 0 : i64, tpu.core_type = #tpu.core_type<tc>, window_params = [{transform_indices = @transform_0, window_bounds = array<i64: 16, 32>}, {pipeline_mode = #tpu.pipeline_mode<synchronous>, transform_indices = @transform_1, window_bounds = array<i64: 32, 128>}, {pipeline_mode = #tpu.pipeline_mode<synchronous>, transform_indices = @transform_2, window_bounds = array<i64: 1, 128>}, {pipeline_mode = #tpu.pipeline_mode<synchronous>, transform_indices = @transform_3, window_bounds = array<i64: 128, 128>}, {pipeline_mode = #tpu.pipeline_mode<synchronous>, transform_indices = @transform_4, window_bounds = array<i64: 1, 128>}, {pipeline_mode = #tpu.pipeline_mode<synchronous>, transform_indices = @transform_5, window_bounds = array<i64: 128, 128>}, {pipeline_mode = #tpu.pipeline_mode<synchronous>, transform_indices = @transform_6, window_bounds = array<i64: 1, 128>}, {transform_indices = @transform_7, window_bounds = array<i64: 16, 128>}]} {
    %c0 = arith.constant 0 : index
    %c0_0 = arith.constant 0 : index
    %0 = vector.load %arg1[%c0, %c0_0] : memref<16x32xf32, #tpu.memory_space<vmem>>, vector<16x32xf32>
    %1 = arith.truncf %0 : vector<16x32xf32> to vector<16x32xbf16>
    %c0_1 = arith.constant 0 : index
    %c0_2 = arith.constant 0 : index
    %2 = vector.load %arg2[%c0_1, %c0_2] : memref<32x128xbf16, #tpu.memory_space<vmem>>, vector<32x128xbf16>
    %cst = arith.constant dense<0.000000e+00> : vector<16x128xf32>
    %3 = tpu.matmul %1, %2, %cst {dimension_numbers = #tpu.dot_dimension_numbers<[1], [0], [0], [1], [0, 0, 1, 1], [], []>} : vector<16x32xbf16>, vector<32x128xbf16>, vector<16x128xf32> -> vector<16x128xf32>
    %c0_3 = arith.constant 0 : index
    %c0_4 = arith.constant 0 : index
    %4 = vector.load %arg3[%c0_3, %c0_4] : memref<1x128xf32, #tpu.memory_space<vmem>>, vector<1x128xf32>
    %5 = vector.broadcast %4 : vector<1x128xf32> to vector<16x128xf32>
    %6 = arith.addf %3, %5 : vector<16x128xf32>
    %cst_5 = arith.constant 0.000000e+00 : f32
    %7 = vector.broadcast %cst_5 : f32 to vector<16x128xf32>
    %8 = arith.maximumf %6, %7 : vector<16x128xf32>
    %9 = arith.truncf %8 : vector<16x128xf32> to vector<16x128xbf16>
    %c0_6 = arith.constant 0 : index
    %c0_7 = arith.constant 0 : index
    %10 = vector.load %arg4[%c0_6, %c0_7] : memref<128x128xbf16, #tpu.memory_space<vmem>>, vector<128x128xbf16>
    %cst_8 = arith.constant dense<0.000000e+00> : vector<16x128xf32>
    %11 = tpu.matmul %9, %10, %cst_8 {dimension_numbers = #tpu.dot_dimension_numbers<[1], [0], [0], [1], [0, 0, 1, 1], [], []>} : vector<16x128xbf16>, vector<128x128xbf16>, vector<16x128xf32> -> vector<16x128xf32>
    %c0_9 = arith.constant 0 : index
    %c0_10 = arith.constant 0 : index
    %12 = vector.load %arg5[%c0_9, %c0_10] : memref<1x128xf32, #tpu.memory_space<vmem>>, vector<1x128xf32>
    %13 = vector.broadcast %12 : vector<1x128xf32> to vector<16x128xf32>
    %14 = arith.addf %11, %13 : vector<16x128xf32>
    %cst_11 = arith.constant 0.000000e+00 : f32
    %15 = vector.broadcast %cst_11 : f32 to vector<16x128xf32>
    %16 = arith.maximumf %14, %15 : vector<16x128xf32>
    %17 = arith.truncf %16 : vector<16x128xf32> to vector<16x128xbf16>
    %c0_12 = arith.constant 0 : index
    %c0_13 = arith.constant 0 : index
    %18 = vector.load %arg6[%c0_12, %c0_13] : memref<128x128xbf16, #tpu.memory_space<vmem>>, vector<128x128xbf16>
    %cst_14 = arith.constant dense<0.000000e+00> : vector<16x128xf32>
    %19 = tpu.matmul %17, %18, %cst_14 {dimension_numbers = #tpu.dot_dimension_numbers<[1], [0], [0], [1], [0, 0, 1, 1], [], []>} : vector<16x128xbf16>, vector<128x128xbf16>, vector<16x128xf32> -> vector<16x128xf32>
    %c0_15 = arith.constant 0 : index
    %c0_16 = arith.constant 0 : index
    %20 = vector.load %arg7[%c0_15, %c0_16] : memref<1x128xf32, #tpu.memory_space<vmem>>, vector<1x128xf32>
    %21 = vector.broadcast %20 : vector<1x128xf32> to vector<16x128xf32>
    %22 = arith.addf %19, %21 : vector<16x128xf32>
    %c0_17 = arith.constant 0 : index
    %c0_18 = arith.constant 0 : index
    %23 = vector.load %arg8[%c0_17, %c0_18] : memref<16x128xf32, #tpu.memory_space<vmem>>, vector<16x128xf32>
    tpu.vector_store %arg8[%c0_17, %c0_18], %22 {strides = array<i32>} : memref<16x128xf32, #tpu.memory_space<vmem>>, vector<16x128xf32>,
    return
  }
  func.func @transform_0(%arg0: i32) -> (i32, i32) {
    %c0_i32 = arith.constant 0 : i32
    %c0_i32_0 = arith.constant 0 : i32
    return %arg0, %c0_i32 : i32, i32
  }
  func.func @transform_1(%arg0: i32) -> (i32, i32) {
    %c0_i32 = arith.constant 0 : i32
    %c0_i32_0 = arith.constant 0 : i32
    %c0_i32_1 = arith.constant 0 : i32
    return %c0_i32, %c0_i32_0 : i32, i32
  }
  func.func @transform_2(%arg0: i32) -> (i32, i32) {
    %c0_i32 = arith.constant 0 : i32
    %c0_i32_0 = arith.constant 0 : i32
    %c0_i32_1 = arith.constant 0 : i32
    return %c0_i32, %c0_i32_0 : i32, i32
  }
  func.func @transform_3(%arg0: i32) -> (i32, i32) {
    %c0_i32 = arith.constant 0 : i32
    %c0_i32_0 = arith.constant 0 : i32
    %c0_i32_1 = arith.constant 0 : i32
    return %c0_i32, %c0_i32_0 : i32, i32
  }
  func.func @transform_4(%arg0: i32) -> (i32, i32) {
    %c0_i32 = arith.constant 0 : i32
    %c0_i32_0 = arith.constant 0 : i32
    %c0_i32_1 = arith.constant 0 : i32
    return %c0_i32, %c0_i32_0 : i32, i32
  }
  func.func @transform_5(%arg0: i32) -> (i32, i32) {
    %c0_i32 = arith.constant 0 : i32
    %c0_i32_0 = arith.constant 0 : i32
    %c0_i32_1 = arith.constant 0 : i32
    return %c0_i32, %c0_i32_0 : i32, i32
  }
  func.func @transform_6(%arg0: i32) -> (i32, i32) {
    %c0_i32 = arith.constant 0 : i32
    %c0_i32_0 = arith.constant 0 : i32
    %c0_i32_1 = arith.constant 0 : i32
    return %c0_i32, %c0_i32_0 : i32, i32
  }
  func.func @transform_7(%arg0: i32) -> (i32, i32) {
    %c0_i32 = arith.constant 0 : i32
    %c0_i32_0 = arith.constant 0 : i32
    return %arg0, %c0_i32 : i32, i32
  }
}

module attributes {stable_mosaic.version = 11 : i64} {
  func.func @encoder_style_kernel(%arg0: i32, %arg1: memref<16x32xf32, #tpu.memory_space<vmem>>, %arg2: memref<32x128xbf16, #tpu.memory_space<vmem>>, %arg3: memref<1x128xf32, #tpu.memory_space<vmem>>, %arg4: memref<128x128xbf16, #tpu.memory_space<vmem>>, %arg5: memref<1x128xf32, #tpu.memory_space<vmem>>, %arg6: memref<128x128xbf16, #tpu.memory_space<vmem>>, %arg7: memref<1x128xf32, #tpu.memory_space<vmem>>, %arg8: memref<16x128xf32, #tpu.memory_space<vmem>>) attributes {dimension_semantics = [#tpu.dimension_semantics<parallel>], iteration_bounds = array<i64: 1>, scalar_prefetch = 0 : i64, scratch_operands = 0 : i64, tpu.core_type = #tpu.core_type<tc>, window_params = [{transform_indices = @transform_0, window_bounds = array<i64: 16, 32>}, {pipeline_mode = #tpu.pipeline_mode<synchronous>, transform_indices = @transform_1, window_bounds = array<i64: 32, 128>}, {pipeline_mode = #tpu.pipeline_mode<synchronous>, transform_indices = @transform_2, window_bounds = array<i64: 1, 128>}, {pipeline_mode = #tpu.pipeline_mode<synchronous>, transform_indices = @transform_3, window_bounds = array<i64: 128, 128>}, {pipeline_mode = #tpu.pipeline_mode<synchronous>, transform_indices = @transform_4, window_bounds = array<i64: 1, 128>}, {pipeline_mode = #tpu.pipeline_mode<synchronous>, transform_indices = @transform_5, window_bounds = array<i64: 128, 128>}, {pipeline_mode = #tpu.pipeline_mode<synchronous>, transform_indices = @transform_6, window_bounds = array<i64: 1, 128>}, {transform_indices = @transform_7, window_bounds = array<i64: 16, 128>}]} {
    %c0 = arith.constant 0 : index
    %c0_0 = arith.constant 0 : index
    %0 = vector.load %arg1[%c0, %c0_0] : memref<16x32xf32, #tpu.memory_space<vmem>>, vector<16x32xf32>
    %1 = arith.truncf %0 : vector<16x32xf32> to vector<16x32xbf16>
    %c0_1 = arith.constant 0 : index
    %c0_2 = arith.constant 0 : index
    %2 = vector.load %arg2[%c0_1, %c0_2] : memref<32x128xbf16, #tpu.memory_space<vmem>>, vector<32x128xbf16>
    %cst = arith.constant dense<0.000000e+00> : vector<16x128xf32>
    %3 = tpu.matmul %1, %2, %cst {dimension_numbers = #tpu.dot_dimension_numbers<[1], [0], [0], [1], [0, 0, 1, 1], [], []>} : vector<16x32xbf16>, vector<32x128xbf16>, vector<16x128xf32> -> vector<16x128xf32>
    %c0_3 = arith.constant 0 : index
    %c0_4 = arith.constant 0 : index
    %4 = vector.load %arg3[%c0_3, %c0_4] : memref<1x128xf32, #tpu.memory_space<vmem>>, vector<1x128xf32>
    %5 = vector.broadcast %4 : vector<1x128xf32> to vector<16x128xf32>
    %6 = arith.addf %3, %5 : vector<16x128xf32>
    %cst_5 = arith.constant 0.000000e+00 : f32
    %7 = vector.broadcast %cst_5 : f32 to vector<16x128xf32>
    %8 = arith.maximumf %6, %7 : vector<16x128xf32>
    %9 = arith.truncf %8 : vector<16x128xf32> to vector<16x128xbf16>
    %c0_6 = arith.constant 0 : index
    %c0_7 = arith.constant 0 : index
    %10 = vector.load %arg4[%c0_6, %c0_7] : memref<128x128xbf16, #tpu.memory_space<vmem>>, vector<128x128xbf16>
    %cst_8 = arith.constant dense<0.000000e+00> : vector<16x128xf32>
    %11 = tpu.matmul %9, %10, %cst_8 {dimension_numbers = #tpu.dot_dimension_numbers<[1], [0], [0], [1], [0, 0, 1, 1], [], []>} : vector<16x128xbf16>, vector<128x128xbf16>, vector<16x128xf32> -> vector<16x128xf32>
    %c0_9 = arith.constant 0 : index
    %c0_10 = arith.constant 0 : index
    %12 = vector.load %arg5[%c0_9, %c0_10] : memref<1x128xf32, #tpu.memory_space<vmem>>, vector<1x128xf32>
    %13 = vector.broadcast %12 : vector<1x128xf32> to vector<16x128xf32>
    %14 = arith.addf %11, %13 : vector<16x128xf32>
    %cst_11 = arith.constant 0.000000e+00 : f32
    %15 = vector.broadcast %cst_11 : f32 to vector<16x128xf32>
    %16 = arith.maximumf %14, %15 : vector<16x128xf32>
    %17 = arith.truncf %16 : vector<16x128xf32> to vector<16x128xbf16>
    %c0_12 = arith.constant 0 : index
    %c0_13 = arith.constant 0 : index
    %18 = vector.load %arg6[%c0_12, %c0_13] : memref<128x128xbf16, #tpu.memory_space<vmem>>, vector<128x128xbf16>
    %cst_14 = arith.constant dense<0.000000e+00> : vector<16x128xf32>
    %19 = tpu.matmul %17, %18, %cst_14 {dimension_numbers = #tpu.dot_dimension_numbers<[1], [0], [0], [1], [0, 0, 1, 1], [], []>} : vector<16x128xbf16>, vector<128x128xbf16>, vector<16x128xf32> -> vector<16x128xf32>
    %c0_15 = arith.constant 0 : index
    %c0_16 = arith.constant 0 : index
    %20 = vector.load %arg7[%c0_15, %c0_16] : memref<1x128xf32, #tpu.memory_space<vmem>>, vector<1x128xf32>
    %21 = vector.broadcast %20 : vector<1x128xf32> to vector<16x128xf32>
    %22 = arith.addf %19, %21 : vector<16x128xf32>
    %c0_17 = arith.constant 0 : index
    %c0_18 = arith.constant 0 : index
    %23 = vector.load %arg8[%c0_17, %c0_18] : memref<16x128xf32, #tpu.memory_space<vmem>>, vector<16x128xf32>
    tpu.vector_store %arg8[%c0_17, %c0_18], %22 {strides = array<i32>} : memref<16x128xf32, #tpu.memory_space<vmem>>, vector<16x128xf32>,
    return
  }
  func.func @transform_0(%arg0: i32) -> (i32, i32) {
    %c0_i32 = arith.constant 0 : i32
    %c0_i32_0 = arith.constant 0 : i32
    return %arg0, %c0_i32 : i32, i32
  }
  func.func @transform_1(%arg0: i32) -> (i32, i32) {
    %c0_i32 = arith.constant 0 : i32
    %c0_i32_0 = arith.constant 0 : i32
    %c0_i32_1 = arith.constant 0 : i32
    return %c0_i32, %c0_i32_0 : i32, i32
  }
  func.func @transform_2(%arg0: i32) -> (i32, i32) {
    %c0_i32 = arith.constant 0 : i32
    %c0_i32_0 = arith.constant 0 : i32
    %c0_i32_1 = arith.constant 0 : i32
    return %c0_i32, %c0_i32_0 : i32, i32
  }
  func.func @transform_3(%arg0: i32) -> (i32, i32) {
    %c0_i32 = arith.constant 0 : i32
    %c0_i32_0 = arith.constant 0 : i32
    %c0_i32_1 = arith.constant 0 : i32
    return %c0_i32, %c0_i32_0 : i32, i32
  }
  func.func @transform_4(%arg0: i32) -> (i32, i32) {
    %c0_i32 = arith.constant 0 : i32
    %c0_i32_0 = arith.constant 0 : i32
    %c0_i32_1 = arith.constant 0 : i32
    return %c0_i32, %c0_i32_0 : i32, i32
  }
  func.func @transform_5(%arg0: i32) -> (i32, i32) {
    %c0_i32 = arith.constant 0 : i32
    %c0_i32_0 = arith.constant 0 : i32
    %c0_i32_1 = arith.constant 0 : i32
    return %c0_i32, %c0_i32_0 : i32, i32
  }
  func.func @transform_6(%arg0: i32) -> (i32, i32) {
    %c0_i32 = arith.constant 0 : i32
    %c0_i32_0 = arith.constant 0 : i32
    %c0_i32_1 = arith.constant 0 : i32
    return %c0_i32, %c0_i32_0 : i32, i32
  }
  func.func @transform_7(%arg0: i32) -> (i32, i32) {
    %c0_i32 = arith.constant 0 : i32
    %c0_i32_0 = arith.constant 0 : i32
    return %arg0, %c0_i32 : i32, i32
  }
}

</mosaic_0001>

<llo_original>
// kernel: _encoder_call.1
$region0: #{_encoder_call.1}
  #allocation0 [shape = 'u32[]', space=smem, size = 0x4, offset = 0x4, fixed_abs, tag = 'smem constant byte address 0x4 - core index']
  #allocation1 [shape = 'u32[144,128]{1,0:T(1,128)}', space=vmem, size = 0x12000, scoped, tag = 'internal scratch']
  %s0 = inlined_call_operand.vmem [shape: f32[16,32], index: 0, kind: input, shape index: {}]
  %s1 = inlined_call_operand.vmem [shape: bf16[32,128], index: 1, kind: input, shape index: {}]
  %s2 = inlined_call_operand.vmem [shape: f32[1,128], index: 2, kind: input, shape index: {}]
  %s3 = inlined_call_operand.hbm [shape: bf16[128,128], index: 3, kind: input, shape index: {}]
  %s4 = inlined_call_operand.vmem [shape: f32[1,128], index: 4, kind: input, shape index: {}]
  %s5 = inlined_call_operand.hbm [shape: bf16[128,128], index: 5, kind: input, shape index: {}]
  %s6 = inlined_call_operand.vmem [shape: f32[1,128], index: 6, kind: input, shape index: {}]
  %s7 = inlined_call_operand.hbm [shape: f32[16,128], index: 7, kind: output, shape index: {}]
  %s8 = sld [smem:[#allocation0]]
  $region46: #{_encoder_call.1} parent=0
    _
  %s10 = ssub.s32 1, %s8
  %s11 = scalar_select 0, %s10, %s8
  $region1: #{_encoder_call.1} parent=0
    #allocation2 [shape = 'u8[32768]{0}', space=vmem, size = 0x8000, scoped, tag = 'input window, operand 3, single buffered']
    #allocation3 [shape = 's32[1]{0}', space=sflag, size = 0x4, scoped, tag = 'scoped memory for _encoder_call.1']
    #allocation4 [shape = 's32[1]{0}', space=sflag, size = 0x4, scoped, tag = 'scoped memory for _encoder_call.1']
    #allocation5 [shape = 'u8[32768]{0}', space=vmem, size = 0x8000, scoped, tag = 'input window, operand 5, single buffered']
    #allocation6 [shape = 's32[1]{0}', space=sflag, size = 0x4, scoped, tag = 'scoped memory for _encoder_call.1']
    #allocation7 [shape = 'u8[8192]{0}', space=vmem, size = 0x2000, scoped, tag = 'output window, operand 0, single buffered']
    %12 = vsyncpa [#allocation3], 0
    %13 = vsyncpa [#allocation6], 0
    %14 = vsyncpa [#allocation4], 0
    // Predicated region
    $region2: #{_encoder_call.1} parent=1 // pred_check
      _
    $region3: #{_encoder_call.1} parent=1 // pred_check_branch
      %16 = sbr.rel (0) target = $region5
    $region4: #{_encoder_call.1} parent=1 // pred_region
      _
    $region5: #{_encoder_call.1} parent=1 // pred_fallthru
      _
    // Predicated region
    $region6: #{_encoder_call.1} parent=1 // pred_check
      _
    $region7: #{_encoder_call.1} parent=1 // pred_check_branch
      %18 = sbr.rel (0) target = $region9
    $region8: #{_encoder_call.1} parent=1 // pred_region
      _
    $region9: #{_encoder_call.1} parent=1 // pred_fallthru
      _
    // Predicated region
    $region10: #{_encoder_call.1} parent=1 // pred_check
      _
    $region11: #{_encoder_call.1} parent=1 // pred_check_branch
      %20 = sbr.rel (0) target = $region13
    $region12: #{_encoder_call.1} parent=1 // pred_region
      _
    $region13: #{_encoder_call.1} parent=1 // pred_fallthru
      _
    // Predicated region
    $region14: #{_encoder_call.1} parent=1 // pred_check
      _
    $region15: #{_encoder_call.1} parent=1 // pred_check_branch
      %22 = sbr.rel (0) target = $region17
    $region16: #{_encoder_call.1} parent=1 // pred_region
      %s24 = ssub.s32 1024, 1024
      %25 = vsyncadd [#allocation3], %s24
      %s26 = sshll.u32 [#allocation2], 4
      %s27 = int_to_ptr.vmem [resolvable:$true] %s26
      %32 = dma.hbm_to_vmem [thread:$0]  %s3, 1024, %s27, [#allocation3], 64, 64, 4
    $region17: #{_encoder_call.1} parent=1 // pred_fallthru
      _
    // Predicated region
    $region18: #{_encoder_call.1} parent=1 // pred_check
      _
    $region19: #{_encoder_call.1} parent=1 // pred_check_branch
      %34 = sbr.rel (0) target = $region21
    $region20: #{_encoder_call.1} parent=1 // pred_region
      _
    $region21: #{_encoder_call.1} parent=1 // pred_fallthru
      _
    // Predicated region
    $region22: #{_encoder_call.1} parent=1 // pred_check
      _
    $region23: #{_encoder_call.1} parent=1 // pred_check_branch
      %36 = sbr.rel (0) target = $region25
    $region24: #{_encoder_call.1} parent=1 // pred_region
      %s38 = ssub.s32 1024, 1024
      %39 = vsyncadd [#allocation6], %s38
      %s40 = sshll.u32 [#allocation5], 4
      %s41 = int_to_ptr.vmem [resolvable:$true] %s40
      %46 = dma.hbm_to_vmem [thread:$0]  %s5, 1024, %s41, [#allocation6], 64, 64, 4
    $region25: #{_encoder_call.1} parent=1 // pred_fallthru
      _
    // Predicated region
    $region26: #{_encoder_call.1} parent=1 // pred_check
      _
    $region27: #{_encoder_call.1} parent=1 // pred_check_branch
      %48 = sbr.rel (0) target = $region29
    $region28: #{_encoder_call.1} parent=1 // pred_region
      _
    $region29: #{_encoder_call.1} parent=1 // pred_fallthru
      _
    // Predicated region
    $region30: #{_encoder_call.1} parent=1 // pred_check
      _
    $region31: #{_encoder_call.1} parent=1 // pred_check_branch
      %50 = sbr.rel (0) target = $region33
    $region32: #{_encoder_call.1} parent=1 // pred_region
      %51 = dma.done [#allocation3], 1024
    $region33: #{_encoder_call.1} parent=1 // pred_fallthru
      _
    // Predicated region
    $region34: #{_encoder_call.1} parent=1 // pred_check
      _
    $region35: #{_encoder_call.1} parent=1 // pred_check_branch
      %53 = sbr.rel (0) target = $region37
    $region36: #{_encoder_call.1} parent=1 // pred_region
      %54 = dma.done [#allocation6], 1024
    $region37: #{_encoder_call.1} parent=1 // pred_fallthru
      _
    %v56 = vld [vmem:[%s0] sm:$0xff]
    %v57 = vld [vmem:[%s0 + $0x8] sm:$0xff]
    %v58 = vpack.c.bf16 %v57, %v56
    %v59 = vld [vmem:[%s1] sm:$0xf]
    %v60 = vld [vmem:[%s1 + $0x4] sm:$0xf]
    %v61 = vld [vmem:[%s1 + $0x8] sm:$0xf]
    %v62 = vld [vmem:[%s1 + $0xc] sm:$0xf]
    %v63 = vld [vmem:[%s2] sm:$0x1]
    %v65 = vlaneseq
    %v66 = vshrl.u32 %v65, 7
    %v67 = vsub.s32 0, %v66
    %v68 = vrot.slane %v63, %v67
    %v74 = vunpack.c.l.b16 %v59
    %v75 = vunpack.c.l.b16 %v60
    %v76 = vunpack.c.l.b16 %v61
    %v77 = vunpack.c.l.b16 %v62
    %v78 = vpack.c.b16 %v75, %v74
    %v79 = vpack.c.b16 %v77, %v76
    %vm82 = vcmask 261120
    %v84 = vsel %vm82, %v58, 0
    %86 = vmatprep.subr.bf16.mxu0 0
    %87 = vmatpush1.bf16.msra.mxu0 %v78
    %88 = vmatprep.subr.bf16.mxu0 0
    %89 = vmatpush1.bf16.msra.mxu0 %v79
    %90 = vmatprep.subr.bf16.mxu0 0
    %91 = vmatpush1.bf16.msra.mxu0 0
    %92 = vmatprep.subr.bf16.mxu0 0
    %93 = vmatpush1.bf16.msra.mxu0 0
    %94 = vmatprep.subr.bf16.mxu0 0
    %95 = vmatpush1.bf16.msra.mxu0 0
    %96 = vmatprep.subr.bf16.mxu0 0
    %97 = vmatpush1.bf16.msra.mxu0 0
    %98 = vmatprep.subr.bf16.mxu0 0
    %99 = vmatpush1.bf16.msra.mxu0 0
    %100 = vmatprep.subr.bf16.mxu0 0
    %101 = vmatpush1.bf16.msra.mxu0 0
    %102 = vmatprep.subr.bf16.mxu0 0
    %103 = vmatpush1.bf16.msra.mxu0 0
    %104 = vmatprep.subr.bf16.mxu0 0
    %105 = vmatpush1.bf16.msra.mxu0 0
    %106 = vmatprep.subr.bf16.mxu0 0
    %107 = vmatpush1.bf16.msra.mxu0 0
    %108 = vmatprep.subr.bf16.mxu0 0
    %109 = vmatpush1.bf16.msra.mxu0 0
    %110 = vmatprep.subr.bf16.mxu0 0
    %111 = vmatpush1.bf16.msra.mxu0 0
    %112 = vmatprep.subr.bf16.mxu0 0
    %113 = vmatpush1.bf16.msra.mxu0 0
    %114 = vmatprep.subr.bf16.mxu0 0
    %115 = vmatpush1.bf16.msra.mxu0 0
    %116 = vmatprep.subr.bf16.mxu0 0
    %117 = vmatpush1.bf16.msra.mxu0 0
    %118 = vmatprep.mubr.bf16.mxu0 0
    %119 = vmatmul.mubr.bf16.gmra.mrb[0].mxu0 %v84
    %v120 = vpop.f32.mrb[0].mxu0
    %v121 = vadd.f32 %v68, %v120
    %v122 = vpop.f32.mrb[0].mxu0
    %v123 = vpop.f32.mrb[0].mxu0
    %v124 = vadd.f32 %v68, %v123
    %v125 = vpop.f32.mrb[0].mxu0
    %126 = vdwg.mxu0
    %v127 = vmax.f32 %v121, 0.0
    %v128 = vmax.f32 %v124, 0.0
    %v129 = vpack.c.bf16 %v128, %v127
    %v130 = vld [vmem:[#allocation2] sm:$0xf]
    %v131 = vld [vmem:[#allocation2 + $0x4] sm:$0xf]
    %v132 = vld [vmem:[#allocation2 + $0x8] sm:$0xf]
    %v133 = vld [vmem:[#allocation2 + $0xc] sm:$0xf]
    %v134 = vld [vmem:[#allocation2 + $0x10] sm:$0xf]
    %v135 = vld [vmem:[#allocation2 + $0x14] sm:$0xf]
    %v136 = vld [vmem:[#allocation2 + $0x18] sm:$0xf]
    %v137 = vld [vmem:[#allocation2 + $0x1c] sm:$0xf]
    %v138 = vld [vmem:[#allocation2 + $0x20] sm:$0xf]
    %v139 = vld [vmem:[#allocation2 + $0x24] sm:$0xf]
    %v140 = vld [vmem:[#allocation2 + $0x28] sm:$0xf]
    %v141 = vld [vmem:[#allocation2 + $0x2c] sm:$0xf]
    %v142 = vld [vmem:[#allocation2 + $0x30] sm:$0xf]
    %v143 = vld [vmem:[#allocation2 + $0x34] sm:$0xf]
    %v144 = vld [vmem:[#allocation2 + $0x38] sm:$0xf]
    %v145 = vld [vmem:[#allocation2 + $0x3c] sm:$0xf]
    %v146 = vld [vmem:[%s4] sm:$0x1]
    %v148 = vlaneseq
    %v149 = vshrl.u32 %v148, 7
    %v150 = vsub.s32 0, %v149
    %v151 = vrot.slane %v146, %v150
    %v169 = vunpack.c.l.b16 %v130
    %v170 = vunpack.c.l.b16 %v131
    %v171 = vunpack.c.l.b16 %v132
    %v172 = vunpack.c.l.b16 %v133
    %v173 = vunpack.c.l.b16 %v134
    %v174 = vunpack.c.l.b16 %v135
    %v175 = vunpack.c.l.b16 %v136
    %v176 = vunpack.c.l.b16 %v137
    %v177 = vunpack.c.l.b16 %v138
    %v178 = vunpack.c.l.b16 %v139
    %v179 = vunpack.c.l.b16 %v140
    %v180 = vunpack.c.l.b16 %v141
    %v181 = vunpack.c.l.b16 %v142
    %v182 = vunpack.c.l.b16 %v143
    %v183 = vunpack.c.l.b16 %v144
    %v184 = vunpack.c.l.b16 %v145
    %v185 = vpack.c.b16 %v170, %v169
    %v186 = vpack.c.b16 %v172, %v171
    %v187 = vpack.c.b16 %v174, %v173
    %v188 = vpack.c.b16 %v176, %v175
    %v189 = vpack.c.b16 %v178, %v177
    %v190 = vpack.c.b16 %v180, %v179
    %v191 = vpack.c.b16 %v182, %v181
    %v192 = vpack.c.b16 %v184, %v183
    %201 = vmatprep.subr.bf16.mxu0 0
    %202 = vmatpush1.bf16.msra.mxu0 %v185
    %203 = vmatprep.subr.bf16.mxu0 0
    %204 = vmatpush1.bf16.msra.mxu0 %v186
    %205 = vmatprep.subr.bf16.mxu0 0
    %206 = vmatpush1.bf16.msra.mxu0 %v187
    %207 = vmatprep.subr.bf16.mxu0 0
    %208 = vmatpush1.bf16.msra.mxu0 %v188
    %209 = vmatprep.subr.bf16.mxu0 0
    %210 = vmatpush1.bf16.msra.mxu0 %v189
    %211 = vmatprep.subr.bf16.mxu0 0
    %212 = vmatpush1.bf16.msra.mxu0 %v190
    %213 = vmatprep.subr.bf16.mxu0 0
    %214 = vmatpush1.bf16.msra.mxu0 %v191
    %215 = vmatprep.subr.bf16.mxu0 0
    %216 = vmatpush1.bf16.msra.mxu0 %v192
    %217 = vmatprep.subr.bf16.mxu0 0
    %218 = vmatpush1.bf16.msra.mxu0 0
    %219 = vmatprep.subr.bf16.mxu0 0
    %220 = vmatpush1.bf16.msra.mxu0 0
    %221 = vmatprep.subr.bf16.mxu0 0
    %222 = vmatpush1.bf16.msra.mxu0 0
    %223 = vmatprep.subr.bf16.mxu0 0
    %224 = vmatpush1.bf16.msra.mxu0 0
    %225 = vmatprep.subr.bf16.mxu0 0
    %226 = vmatpush1.bf16.msra.mxu0 0
    %227 = vmatprep.subr.bf16.mxu0 0
    %228 = vmatpush1.bf16.msra.mxu0 0
    %229 = vmatprep.subr.bf16.mxu0 0
    %230 = vmatpush1.bf16.msra.mxu0 0
    %231 = vmatprep.subr.bf16.mxu0 0
    %232 = vmatpush1.bf16.msra.mxu0 0
    %233 = vmatprep.mubr.bf16.mxu0 0
    %234 = vmatmul.mubr.bf16.gmra.mrb[0].mxu0 %v129
    %v235 = vpop.f32.mrb[0].mxu0
    %v236 = vadd.f32 %v151, %v235
    %v237 = vpop.f32.mrb[0].mxu0
    %v238 = vpop.f32.mrb[0].mxu0
    %v239 = vadd.f32 %v151, %v238
    %v240 = vpop.f32.mrb[0].mxu0
    %241 = vdwg.mxu0
    %v242 = vmax.f32 %v236, 0.0
    %v243 = vmax.f32 %v239, 0.0
    %v244 = vpack.c.bf16 %v243, %v242
    %v245 = vld [vmem:[#allocation5] sm:$0xf]
    %v246 = vld [vmem:[#allocation5 + $0x4] sm:$0xf]
    %v247 = vld [vmem:[#allocation5 + $0x8] sm:$0xf]
    %v248 = vld [vmem:[#allocation5 + $0xc] sm:$0xf]
    %v249 = vld [vmem:[#allocation5 + $0x10] sm:$0xf]
    %v250 = vld [vmem:[#allocation5 + $0x14] sm:$0xf]
    %v251 = vld [vmem:[#allocation5 + $0x18] sm:$0xf]
    %v252 = vld [vmem:[#allocation5 + $0x1c] sm:$0xf]
    %v253 = vld [vmem:[#allocation5 + $0x20] sm:$0xf]
    %v254 = vld [vmem:[#allocation5 + $0x24] sm:$0xf]
    %v255 = vld [vmem:[#allocation5 + $0x28] sm:$0xf]
    %v256 = vld [vmem:[#allocation5 + $0x2c] sm:$0xf]
    %v257 = vld [vmem:[#allocation5 + $0x30] sm:$0xf]
    %v258 = vld [vmem:[#allocation5 + $0x34] sm:$0xf]
    %v259 = vld [vmem:[#allocation5 + $0x38] sm:$0xf]
    %v260 = vld [vmem:[#allocation5 + $0x3c] sm:$0xf]
    %v261 = vld [vmem:[%s6] sm:$0x1]
    %v263 = vlaneseq
    %v264 = vshrl.u32 %v263, 7
    %v265 = vsub.s32 0, %v264
    %v266 = vrot.slane %v261, %v265
    %v284 = vunpack.c.l.b16 %v245
    %v285 = vunpack.c.l.b16 %v246
    %v286 = vunpack.c.l.b16 %v247
    %v287 = vunpack.c.l.b16 %v248
    %v288 = vunpack.c.l.b16 %v249
    %v289 = vunpack.c.l.b16 %v250
    %v290 = vunpack.c.l.b16 %v251
    %v291 = vunpack.c.l.b16 %v252
    %v292 = vunpack.c.l.b16 %v253
    %v293 = vunpack.c.l.b16 %v254
    %v294 = vunpack.c.l.b16 %v255
    %v295 = vunpack.c.l.b16 %v256
    %v296 = vunpack.c.l.b16 %v257
    %v297 = vunpack.c.l.b16 %v258
    %v298 = vunpack.c.l.b16 %v259
    %v299 = vunpack.c.l.b16 %v260
    %v300 = vpack.c.b16 %v285, %v284
    %v301 = vpack.c.b16 %v287, %v286
    %v302 = vpack.c.b16 %v289, %v288
    %v303 = vpack.c.b16 %v291, %v290
    %v304 = vpack.c.b16 %v293, %v292
    %v305 = vpack.c.b16 %v295, %v294
    %v306 = vpack.c.b16 %v297, %v296
    %v307 = vpack.c.b16 %v299, %v298
    %316 = vmatprep.subr.bf16.mxu0 0
    %317 = vmatpush1.bf16.msra.mxu0 %v300
    %318 = vmatprep.subr.bf16.mxu0 0
    %319 = vmatpush1.bf16.msra.mxu0 %v301
    %320 = vmatprep.subr.bf16.mxu0 0
    %321 = vmatpush1.bf16.msra.mxu0 %v302
    %322 = vmatprep.subr.bf16.mxu0 0
    %323 = vmatpush1.bf16.msra.mxu0 %v303
    %324 = vmatprep.subr.bf16.mxu0 0
    %325 = vmatpush1.bf16.msra.mxu0 %v304
    %326 = vmatprep.subr.bf16.mxu0 0
    %327 = vmatpush1.bf16.msra.mxu0 %v305
    %328 = vmatprep.subr.bf16.mxu0 0
    %329 = vmatpush1.bf16.msra.mxu0 %v306
    %330 = vmatprep.subr.bf16.mxu0 0
    %331 = vmatpush1.bf16.msra.mxu0 %v307
    %332 = vmatprep.subr.bf16.mxu0 0
    %333 = vmatpush1.bf16.msra.mxu0 0
    %334 = vmatprep.subr.bf16.mxu0 0
    %335 = vmatpush1.bf16.msra.mxu0 0
    %336 = vmatprep.subr.bf16.mxu0 0
    %337 = vmatpush1.bf16.msra.mxu0 0
    %338 = vmatprep.subr.bf16.mxu0 0
    %339 = vmatpush1.bf16.msra.mxu0 0
    %340 = vmatprep.subr.bf16.mxu0 0
    %341 = vmatpush1.bf16.msra.mxu0 0
    %342 = vmatprep.subr.bf16.mxu0 0
    %343 = vmatpush1.bf16.msra.mxu0 0
    %344 = vmatprep.subr.bf16.mxu0 0
    %345 = vmatpush1.bf16.msra.mxu0 0
    %346 = vmatprep.subr.bf16.mxu0 0
    %347 = vmatpush1.bf16.msra.mxu0 0
    %348 = vmatprep.mubr.bf16.mxu0 0
    %349 = vmatmul.mubr.bf16.gmra.mrb[0].mxu0 %v244
    %v350 = vpop.f32.mrb[0].mxu0
    %v351 = vadd.f32 %v266, %v350
    %v352 = vpop.f32.mrb[0].mxu0
    %v353 = vpop.f32.mrb[0].mxu0
    %v354 = vadd.f32 %v266, %v353
    %v355 = vpop.f32.mrb[0].mxu0
    %356 = vdwg.mxu0
    %357 = vst [vmem:[#allocation7] sm:$0xff] %v351
    %358 = vst [vmem:[#allocation7 + $0x8] sm:$0xff] %v354
    // Predicated region
    $region38: #{_encoder_call.1} parent=1 // pred_check
      _
    $region39: #{_encoder_call.1} parent=1 // pred_check_branch
      %360 = sbr.rel (0) target = $region41
    $region40: #{_encoder_call.1} parent=1 // pred_region
      %s362 = ssub.s32 256, 256
      %363 = vsyncadd [#allocation4], %s362
      %s364 = sshll.u32 [#allocation7], 4
      %s365 = int_to_ptr.vmem [resolvable:$true] %s364
      %370 = dma.vmem_to_hbm [thread:$0]  %s365, 256, %s7, [#allocation4], 128, 128, 8
    $region41: #{_encoder_call.1} parent=1 // pred_fallthru
      _
    // Predicated region
    $region42: #{_encoder_call.1} parent=1 // pred_check
      _
    $region43: #{_encoder_call.1} parent=1 // pred_check_branch
      %372 = sbr.rel (0) target = $region45
    $region44: #{_encoder_call.1} parent=1 // pred_region
      %373 = dma.done [#allocation4], 256
    $region45: #{_encoder_call.1} parent=1 // pred_fallthru
      _
    %374 = vsyncpa [#allocation3], 1
    %375 = vsyncpa [#allocation6], 1
    %376 = vsyncpa [#allocation4], 1

// kernel: _encoder_call.1
$region0: #{_encoder_call.1}
  #allocation0 [shape = 'u32[]', space=smem, size = 0x4, offset = 0x4, fixed_abs, tag = 'smem constant byte address 0x4 - core index']
  #allocation1 [shape = 'u32[144,128]{1,0:T(1,128)}', space=vmem, size = 0x12000, scoped, tag = 'internal scratch']
  %s0 = inlined_call_operand.vmem [shape: f32[16,32], index: 0, kind: input, shape index: {}]
  %s1 = inlined_call_operand.vmem [shape: bf16[32,128], index: 1, kind: input, shape index: {}]
  %s2 = inlined_call_operand.vmem [shape: f32[1,128], index: 2, kind: input, shape index: {}]
  %s3 = inlined_call_operand.hbm [shape: bf16[128,128], index: 3, kind: input, shape index: {}]
  %s4 = inlined_call_operand.vmem [shape: f32[1,128], index: 4, kind: input, shape index: {}]
  %s5 = inlined_call_operand.hbm [shape: bf16[128,128], index: 5, kind: input, shape index: {}]
  %s6 = inlined_call_operand.vmem [shape: f32[1,128], index: 6, kind: input, shape index: {}]
  %s7 = inlined_call_operand.hbm [shape: f32[16,128], index: 7, kind: output, shape index: {}]
  %s8 = sld [smem:[#allocation0]]
  $region46: #{_encoder_call.1} parent=0
    _
  %s10 = ssub.s32 1, %s8
  %s11 = scalar_select 0, %s10, %s8
  $region1: #{_encoder_call.1} parent=0
    #allocation2 [shape = 'u8[32768]{0}', space=vmem, size = 0x8000, scoped, tag = 'input window, operand 3, single buffered']
    #allocation3 [shape = 's32[1]{0}', space=sflag, size = 0x4, scoped, tag = 'scoped memory for _encoder_call.1']
    #allocation4 [shape = 's32[1]{0}', space=sflag, size = 0x4, scoped, tag = 'scoped memory for _encoder_call.1']
    #allocation5 [shape = 'u8[32768]{0}', space=vmem, size = 0x8000, scoped, tag = 'input window, operand 5, single buffered']
    #allocation6 [shape = 's32[1]{0}', space=sflag, size = 0x4, scoped, tag = 'scoped memory for _encoder_call.1']
    #allocation7 [shape = 'u8[8192]{0}', space=vmem, size = 0x2000, scoped, tag = 'output window, operand 0, single buffered']
    %12 = vsyncpa [#allocation3], 0
    %13 = vsyncpa [#allocation6], 0
    %14 = vsyncpa [#allocation4], 0
    // Predicated region
    $region2: #{_encoder_call.1} parent=1 // pred_check
      _
    $region3: #{_encoder_call.1} parent=1 // pred_check_branch
      %16 = sbr.rel (0) target = $region5
    $region4: #{_encoder_call.1} parent=1 // pred_region
      _
    $region5: #{_encoder_call.1} parent=1 // pred_fallthru
      _
    // Predicated region
    $region6: #{_encoder_call.1} parent=1 // pred_check
      _
    $region7: #{_encoder_call.1} parent=1 // pred_check_branch
      %18 = sbr.rel (0) target = $region9
    $region8: #{_encoder_call.1} parent=1 // pred_region
      _
    $region9: #{_encoder_call.1} parent=1 // pred_fallthru
      _
    // Predicated region
    $region10: #{_encoder_call.1} parent=1 // pred_check
      _
    $region11: #{_encoder_call.1} parent=1 // pred_check_branch
      %20 = sbr.rel (0) target = $region13
    $region12: #{_encoder_call.1} parent=1 // pred_region
      _
    $region13: #{_encoder_call.1} parent=1 // pred_fallthru
      _
    // Predicated region
    $region14: #{_encoder_call.1} parent=1 // pred_check
      _
    $region15: #{_encoder_call.1} parent=1 // pred_check_branch
      %22 = sbr.rel (0) target = $region17
    $region16: #{_encoder_call.1} parent=1 // pred_region
      %s24 = ssub.s32 1024, 1024
      %25 = vsyncadd [#allocation3], %s24
      %s26 = sshll.u32 [#allocation2], 4
      %s27 = int_to_ptr.vmem [resolvable:$true] %s26
      %32 = dma.hbm_to_vmem [thread:$0]  %s3, 1024, %s27, [#allocation3], 64, 64, 4
    $region17: #{_encoder_call.1} parent=1 // pred_fallthru
      _
    // Predicated region
    $region18: #{_encoder_call.1} parent=1 // pred_check
      _
    $region19: #{_encoder_call.1} parent=1 // pred_check_branch
      %34 = sbr.rel (0) target = $region21
    $region20: #{_encoder_call.1} parent=1 // pred_region
      _
    $region21: #{_encoder_call.1} parent=1 // pred_fallthru
      _
    // Predicated region
    $region22: #{_encoder_call.1} parent=1 // pred_check
      _
    $region23: #{_encoder_call.1} parent=1 // pred_check_branch
      %36 = sbr.rel (0) target = $region25
    $region24: #{_encoder_call.1} parent=1 // pred_region
      %s38 = ssub.s32 1024, 1024
      %39 = vsyncadd [#allocation6], %s38
      %s40 = sshll.u32 [#allocation5], 4
      %s41 = int_to_ptr.vmem [resolvable:$true] %s40
      %46 = dma.hbm_to_vmem [thread:$0]  %s5, 1024, %s41, [#allocation6], 64, 64, 4
    $region25: #{_encoder_call.1} parent=1 // pred_fallthru
      _
    // Predicated region
    $region26: #{_encoder_call.1} parent=1 // pred_check
      _
    $region27: #{_encoder_call.1} parent=1 // pred_check_branch
      %48 = sbr.rel (0) target = $region29
    $region28: #{_encoder_call.1} parent=1 // pred_region
      _
    $region29: #{_encoder_call.1} parent=1 // pred_fallthru
      _
    // Predicated region
    $region30: #{_encoder_call.1} parent=1 // pred_check
      _
    $region31: #{_encoder_call.1} parent=1 // pred_check_branch
      %50 = sbr.rel (0) target = $region33
    $region32: #{_encoder_call.1} parent=1 // pred_region
      %51 = dma.done [#allocation3], 1024
    $region33: #{_encoder_call.1} parent=1 // pred_fallthru
      _
    // Predicated region
    $region34: #{_encoder_call.1} parent=1 // pred_check
      _
    $region35: #{_encoder_call.1} parent=1 // pred_check_branch
      %53 = sbr.rel (0) target = $region37
    $region36: #{_encoder_call.1} parent=1 // pred_region
      %54 = dma.done [#allocation6], 1024
    $region37: #{_encoder_call.1} parent=1 // pred_fallthru
      _
    %v56 = vld [vmem:[%s0] sm:$0xff]
    %v57 = vld [vmem:[%s0 + $0x8] sm:$0xff]
    %v58 = vpack.c.bf16 %v57, %v56
    %v59 = vld [vmem:[%s1] sm:$0xf]
    %v60 = vld [vmem:[%s1 + $0x4] sm:$0xf]
    %v61 = vld [vmem:[%s1 + $0x8] sm:$0xf]
    %v62 = vld [vmem:[%s1 + $0xc] sm:$0xf]
    %v63 = vld [vmem:[%s2] sm:$0x1]
    %v65 = vlaneseq
    %v66 = vshrl.u32 %v65, 7
    %v67 = vsub.s32 0, %v66
    %v68 = vrot.slane %v63, %v67
    %v74 = vunpack.c.l.b16 %v59
    %v75 = vunpack.c.l.b16 %v60
    %v76 = vunpack.c.l.b16 %v61
    %v77 = vunpack.c.l.b16 %v62
    %v78 = vpack.c.b16 %v75, %v74
    %v79 = vpack.c.b16 %v77, %v76
    %vm82 = vcmask 261120
    %v84 = vsel %vm82, %v58, 0
    %86 = vmatprep.subr.bf16.mxu0 0
    %87 = vmatpush1.bf16.msra.mxu0 %v78
    %88 = vmatprep.subr.bf16.mxu0 0
    %89 = vmatpush1.bf16.msra.mxu0 %v79
    %90 = vmatprep.subr.bf16.mxu0 0
    %91 = vmatpush1.bf16.msra.mxu0 0
    %92 = vmatprep.subr.bf16.mxu0 0
    %93 = vmatpush1.bf16.msra.mxu0 0
    %94 = vmatprep.subr.bf16.mxu0 0
    %95 = vmatpush1.bf16.msra.mxu0 0
    %96 = vmatprep.subr.bf16.mxu0 0
    %97 = vmatpush1.bf16.msra.mxu0 0
    %98 = vmatprep.subr.bf16.mxu0 0
    %99 = vmatpush1.bf16.msra.mxu0 0
    %100 = vmatprep.subr.bf16.mxu0 0
    %101 = vmatpush1.bf16.msra.mxu0 0
    %102 = vmatprep.subr.bf16.mxu0 0
    %103 = vmatpush1.bf16.msra.mxu0 0
    %104 = vmatprep.subr.bf16.mxu0 0
    %105 = vmatpush1.bf16.msra.mxu0 0
    %106 = vmatprep.subr.bf16.mxu0 0
    %107 = vmatpush1.bf16.msra.mxu0 0
    %108 = vmatprep.subr.bf16.mxu0 0
    %109 = vmatpush1.bf16.msra.mxu0 0
    %110 = vmatprep.subr.bf16.mxu0 0
    %111 = vmatpush1.bf16.msra.mxu0 0
    %112 = vmatprep.subr.bf16.mxu0 0
    %113 = vmatpush1.bf16.msra.mxu0 0
    %114 = vmatprep.subr.bf16.mxu0 0
    %115 = vmatpush1.bf16.msra.mxu0 0
    %116 = vmatprep.subr.bf16.mxu0 0
    %117 = vmatpush1.bf16.msra.mxu0 0
    %118 = vmatprep.mubr.bf16.mxu0 0
    %119 = vmatmul.mubr.bf16.gmra.mrb[0].mxu0 %v84
    %v120 = vpop.f32.mrb[0].mxu0
    %v121 = vadd.f32 %v68, %v120
    %v122 = vpop.f32.mrb[0].mxu0
    %v123 = vpop.f32.mrb[0].mxu0
    %v124 = vadd.f32 %v68, %v123
    %v125 = vpop.f32.mrb[0].mxu0
    %126 = vdwg.mxu0
    %v127 = vmax.f32 %v121, 0.0
    %v128 = vmax.f32 %v124, 0.0
    %v129 = vpack.c.bf16 %v128, %v127
    %v130 = vld [vmem:[#allocation2] sm:$0xf]
    %v131 = vld [vmem:[#allocation2 + $0x4] sm:$0xf]
    %v132 = vld [vmem:[#allocation2 + $0x8] sm:$0xf]
    %v133 = vld [vmem:[#allocation2 + $0xc] sm:$0xf]
    %v134 = vld [vmem:[#allocation2 + $0x10] sm:$0xf]
    %v135 = vld [vmem:[#allocation2 + $0x14] sm:$0xf]
    %v136 = vld [vmem:[#allocation2 + $0x18] sm:$0xf]
    %v137 = vld [vmem:[#allocation2 + $0x1c] sm:$0xf]
    %v138 = vld [vmem:[#allocation2 + $0x20] sm:$0xf]
    %v139 = vld [vmem:[#allocation2 + $0x24] sm:$0xf]
    %v140 = vld [vmem:[#allocation2 + $0x28] sm:$0xf]
    %v141 = vld [vmem:[#allocation2 + $0x2c] sm:$0xf]
    %v142 = vld [vmem:[#allocation2 + $0x30] sm:$0xf]
    %v143 = vld [vmem:[#allocation2 + $0x34] sm:$0xf]
    %v144 = vld [vmem:[#allocation2 + $0x38] sm:$0xf]
    %v145 = vld [vmem:[#allocation2 + $0x3c] sm:$0xf]
    %v146 = vld [vmem:[%s4] sm:$0x1]
    %v148 = vlaneseq
    %v149 = vshrl.u32 %v148, 7
    %v150 = vsub.s32 0, %v149
    %v151 = vrot.slane %v146, %v150
    %v169 = vunpack.c.l.b16 %v130
    %v170 = vunpack.c.l.b16 %v131
    %v171 = vunpack.c.l.b16 %v132
    %v172 = vunpack.c.l.b16 %v133
    %v173 = vunpack.c.l.b16 %v134
    %v174 = vunpack.c.l.b16 %v135
    %v175 = vunpack.c.l.b16 %v136
    %v176 = vunpack.c.l.b16 %v137
    %v177 = vunpack.c.l.b16 %v138
    %v178 = vunpack.c.l.b16 %v139
    %v179 = vunpack.c.l.b16 %v140
    %v180 = vunpack.c.l.b16 %v141
    %v181 = vunpack.c.l.b16 %v142
    %v182 = vunpack.c.l.b16 %v143
    %v183 = vunpack.c.l.b16 %v144
    %v184 = vunpack.c.l.b16 %v145
    %v185 = vpack.c.b16 %v170, %v169
    %v186 = vpack.c.b16 %v172, %v171
    %v187 = vpack.c.b16 %v174, %v173
    %v188 = vpack.c.b16 %v176, %v175
    %v189 = vpack.c.b16 %v178, %v177
    %v190 = vpack.c.b16 %v180, %v179
    %v191 = vpack.c.b16 %v182, %v181
    %v192 = vpack.c.b16 %v184, %v183
    %201 = vmatprep.subr.bf16.mxu0 0
    %202 = vmatpush1.bf16.msra.mxu0 %v185
    %203 = vmatprep.subr.bf16.mxu0 0
    %204 = vmatpush1.bf16.msra.mxu0 %v186
    %205 = vmatprep.subr.bf16.mxu0 0
    %206 = vmatpush1.bf16.msra.mxu0 %v187
    %207 = vmatprep.subr.bf16.mxu0 0
    %208 = vmatpush1.bf16.msra.mxu0 %v188
    %209 = vmatprep.subr.bf16.mxu0 0
    %210 = vmatpush1.bf16.msra.mxu0 %v189
    %211 = vmatprep.subr.bf16.mxu0 0
    %212 = vmatpush1.bf16.msra.mxu0 %v190
    %213 = vmatprep.subr.bf16.mxu0 0
    %214 = vmatpush1.bf16.msra.mxu0 %v191
    %215 = vmatprep.subr.bf16.mxu0 0
    %216 = vmatpush1.bf16.msra.mxu0 %v192
    %217 = vmatprep.subr.bf16.mxu0 0
    %218 = vmatpush1.bf16.msra.mxu0 0
    %219 = vmatprep.subr.bf16.mxu0 0
    %220 = vmatpush1.bf16.msra.mxu0 0
    %221 = vmatprep.subr.bf16.mxu0 0
    %222 = vmatpush1.bf16.msra.mxu0 0
    %223 = vmatprep.subr.bf16.mxu0 0
    %224 = vmatpush1.bf16.msra.mxu0 0
    %225 = vmatprep.subr.bf16.mxu0 0
    %226 = vmatpush1.bf16.msra.mxu0 0
    %227 = vmatprep.subr.bf16.mxu0 0
    %228 = vmatpush1.bf16.msra.mxu0 0
    %229 = vmatprep.subr.bf16.mxu0 0
    %230 = vmatpush1.bf16.msra.mxu0 0
    %231 = vmatprep.subr.bf16.mxu0 0
    %232 = vmatpush1.bf16.msra.mxu0 0
    %233 = vmatprep.mubr.bf16.mxu0 0
    %234 = vmatmul.mubr.bf16.gmra.mrb[0].mxu0 %v129
    %v235 = vpop.f32.mrb[0].mxu0
    %v236 = vadd.f32 %v151, %v235
    %v237 = vpop.f32.mrb[0].mxu0
    %v238 = vpop.f32.mrb[0].mxu0
    %v239 = vadd.f32 %v151, %v238
    %v240 = vpop.f32.mrb[0].mxu0
    %241 = vdwg.mxu0
    %v242 = vmax.f32 %v236, 0.0
    %v243 = vmax.f32 %v239, 0.0
    %v244 = vpack.c.bf16 %v243, %v242
    %v245 = vld [vmem:[#allocation5] sm:$0xf]
    %v246 = vld [vmem:[#allocation5 + $0x4] sm:$0xf]
    %v247 = vld [vmem:[#allocation5 + $0x8] sm:$0xf]
    %v248 = vld [vmem:[#allocation5 + $0xc] sm:$0xf]
    %v249 = vld [vmem:[#allocation5 + $0x10] sm:$0xf]
    %v250 = vld [vmem:[#allocation5 + $0x14] sm:$0xf]
    %v251 = vld [vmem:[#allocation5 + $0x18] sm:$0xf]
    %v252 = vld [vmem:[#allocation5 + $0x1c] sm:$0xf]
    %v253 = vld [vmem:[#allocation5 + $0x20] sm:$0xf]
    %v254 = vld [vmem:[#allocation5 + $0x24] sm:$0xf]
    %v255 = vld [vmem:[#allocation5 + $0x28] sm:$0xf]
    %v256 = vld [vmem:[#allocation5 + $0x2c] sm:$0xf]
    %v257 = vld [vmem:[#allocation5 + $0x30] sm:$0xf]
    %v258 = vld [vmem:[#allocation5 + $0x34] sm:$0xf]
    %v259 = vld [vmem:[#allocation5 + $0x38] sm:$0xf]
    %v260 = vld [vmem:[#allocation5 + $0x3c] sm:$0xf]
    %v261 = vld [vmem:[%s6] sm:$0x1]
    %v263 = vlaneseq
    %v264 = vshrl.u32 %v263, 7
    %v265 = vsub.s32 0, %v264
    %v266 = vrot.slane %v261, %v265
    %v284 = vunpack.c.l.b16 %v245
    %v285 = vunpack.c.l.b16 %v246
    %v286 = vunpack.c.l.b16 %v247
    %v287 = vunpack.c.l.b16 %v248
    %v288 = vunpack.c.l.b16 %v249
    %v289 = vunpack.c.l.b16 %v250
    %v290 = vunpack.c.l.b16 %v251
    %v291 = vunpack.c.l.b16 %v252
    %v292 = vunpack.c.l.b16 %v253
    %v293 = vunpack.c.l.b16 %v254
    %v294 = vunpack.c.l.b16 %v255
    %v295 = vunpack.c.l.b16 %v256
    %v296 = vunpack.c.l.b16 %v257
    %v297 = vunpack.c.l.b16 %v258
    %v298 = vunpack.c.l.b16 %v259
    %v299 = vunpack.c.l.b16 %v260
    %v300 = vpack.c.b16 %v285, %v284
    %v301 = vpack.c.b16 %v287, %v286
    %v302 = vpack.c.b16 %v289, %v288
    %v303 = vpack.c.b16 %v291, %v290
    %v304 = vpack.c.b16 %v293, %v292
    %v305 = vpack.c.b16 %v295, %v294
    %v306 = vpack.c.b16 %v297, %v296
    %v307 = vpack.c.b16 %v299, %v298
    %316 = vmatprep.subr.bf16.mxu0 0
    %317 = vmatpush1.bf16.msra.mxu0 %v300
    %318 = vmatprep.subr.bf16.mxu0 0
    %319 = vmatpush1.bf16.msra.mxu0 %v301
    %320 = vmatprep.subr.bf16.mxu0 0
    %321 = vmatpush1.bf16.msra.mxu0 %v302
    %322 = vmatprep.subr.bf16.mxu0 0
    %323 = vmatpush1.bf16.msra.mxu0 %v303
    %324 = vmatprep.subr.bf16.mxu0 0
    %325 = vmatpush1.bf16.msra.mxu0 %v304
    %326 = vmatprep.subr.bf16.mxu0 0
    %327 = vmatpush1.bf16.msra.mxu0 %v305
    %328 = vmatprep.subr.bf16.mxu0 0
    %329 = vmatpush1.bf16.msra.mxu0 %v306
    %330 = vmatprep.subr.bf16.mxu0 0
    %331 = vmatpush1.bf16.msra.mxu0 %v307
    %332 = vmatprep.subr.bf16.mxu0 0
    %333 = vmatpush1.bf16.msra.mxu0 0
    %334 = vmatprep.subr.bf16.mxu0 0
    %335 = vmatpush1.bf16.msra.mxu0 0
    %336 = vmatprep.subr.bf16.mxu0 0
    %337 = vmatpush1.bf16.msra.mxu0 0
    %338 = vmatprep.subr.bf16.mxu0 0
    %339 = vmatpush1.bf16.msra.mxu0 0
    %340 = vmatprep.subr.bf16.mxu0 0
    %341 = vmatpush1.bf16.msra.mxu0 0
    %342 = vmatprep.subr.bf16.mxu0 0
    %343 = vmatpush1.bf16.msra.mxu0 0
    %344 = vmatprep.subr.bf16.mxu0 0
    %345 = vmatpush1.bf16.msra.mxu0 0
    %346 = vmatprep.subr.bf16.mxu0 0
    %347 = vmatpush1.bf16.msra.mxu0 0
    %348 = vmatprep.mubr.bf16.mxu0 0
    %349 = vmatmul.mubr.bf16.gmra.mrb[0].mxu0 %v244
    %v350 = vpop.f32.mrb[0].mxu0
    %v351 = vadd.f32 %v266, %v350
    %v352 = vpop.f32.mrb[0].mxu0
    %v353 = vpop.f32.mrb[0].mxu0
    %v354 = vadd.f32 %v266, %v353
    %v355 = vpop.f32.mrb[0].mxu0
    %356 = vdwg.mxu0
    %357 = vst [vmem:[#allocation7] sm:$0xff] %v351
    %358 = vst [vmem:[#allocation7 + $0x8] sm:$0xff] %v354
    // Predicated region
    $region38: #{_encoder_call.1} parent=1 // pred_check
      _
    $region39: #{_encoder_call.1} parent=1 // pred_check_branch
      %360 = sbr.rel (0) target = $region41
    $region40: #{_encoder_call.1} parent=1 // pred_region
      %s362 = ssub.s32 256, 256
      %363 = vsyncadd [#allocation4], %s362
      %s364 = sshll.u32 [#allocation7], 4
      %s365 = int_to_ptr.vmem [resolvable:$true] %s364
      %370 = dma.vmem_to_hbm [thread:$0]  %s365, 256, %s7, [#allocation4], 128, 128, 8
    $region41: #{_encoder_call.1} parent=1 // pred_fallthru
      _
    // Predicated region
    $region42: #{_encoder_call.1} parent=1 // pred_check
      _
    $region43: #{_encoder_call.1} parent=1 // pred_check_branch
      %372 = sbr.rel (0) target = $region45
    $region44: #{_encoder_call.1} parent=1 // pred_region
      %373 = dma.done [#allocation4], 256
    $region45: #{_encoder_call.1} parent=1 // pred_fallthru
      _
    %374 = vsyncpa [#allocation3], 1
    %375 = vsyncpa [#allocation6], 1
    %376 = vsyncpa [#allocation4], 1

</llo_original>
